<compile_context>
chip_gen: v7x
topology: tpu7x:2x2x1
jax: 0.10.0
libtpu: 0.0.40
codegen_flags: <defaults>
</compile_context>

<pallas_src>
import functools

import numpy as np
import jax
import jax.numpy as jnp
from jax import lax
from jax.experimental import pallas as pl
from jax.experimental.pallas import tpu as pltpu


# ---------------------------------------------------------------------------
# Stage 1: channel pooling (mean + max over C), lane-dense over H*W.
# ---------------------------------------------------------------------------
def _channel_pool_kernel(x_ref, avg_ref, max_ref, *, inv_c):
    # x_ref: (1, tc, HW) block;  avg_ref / max_ref: (1, 1, HW) resident blocks.
    c = pl.program_id(1)
    xb = x_ref[0].astype(jnp.float32)                  # (tc, HW), lane-dense
    psum = jnp.sum(xb, axis=0, keepdims=True)          # (1, HW)
    pmax = jnp.max(xb, axis=0, keepdims=True)          # (1, HW)

    @pl.when(c == 0)
    def _():
        avg_ref[0] = psum
        max_ref[0] = pmax

    @pl.when(c > 0)
    def _():
        avg_ref[0] = avg_ref[0] + psum
        max_ref[0] = jnp.maximum(max_ref[0], pmax)

    @pl.when(c == pl.num_programs(1) - 1)
    def _():
        avg_ref[0] = avg_ref[0] * inv_c                # sum -> mean


def _pick_channel_tile(C, max_tile=32):
    """Divisor of C, preferring multiples of 8, bounded so VMEM/step is small."""
    divs = [d for d in range(1, C + 1) if C % d == 0]
    mult8 = [d for d in divs if d % 8 == 0 and d <= max_tile]
    if mult8:
        return max(mult8)
    small = [d for d in divs if d <= max_tile]
    return max(small) if small else C


# ---------------------------------------------------------------------------
# Stage 2: 7x7 conv (bias) + sigmoid via banded-weight MXU matmuls.
# ---------------------------------------------------------------------------
def _conv7x7_sigmoid_kernel(avg_ref, max_ref, t0_ref, t1_ref, b_ref, o_ref):
    avg = avg_ref[0]                                    # (H, W) f32
    mx = max_ref[0]                                     # (H, W) f32
    H, W = avg.shape
    Wc = t0_ref.shape[1] // 7                           # 128-aligned dy stride

    # Only the H-direction zero padding is materialized (3 rows top/bottom);
    # the W-direction padding is baked into the banded weights.
    z3 = jnp.zeros((3, W), jnp.float32)
    a_p = jnp.concatenate([z3, avg, z3], axis=0)        # (H+6, W)
    m_p = jnp.concatenate([z3, mx, z3], axis=0)         # (H+6, W)

    # One MXU matmul per input plane does the W-direction convolution for all
    # 7 kernel rows:  (H+6, W) @ (W, 7*Wc) -> (H+6, 7*Wc).  Column block dy
    # (width Wc, 128-aligned) holds sum_dx K[c,dy,dx] * plane_c[:, w+dx-3].
    m = (jnp.dot(a_p, t0_ref[...], preferred_element_type=jnp.float32) +
         jnp.dot(m_p, t1_ref[...], preferred_element_type=jnp.float32))

    # H-direction: 7 slices, lane offsets dy*Wc are 128-aligned, only a small
    # sublane offset dy remains.  Shallow add tree (no serial chain).
    parts = [m[dy:dy + H, dy * Wc:dy * Wc + W] for dy in range(7)]
    acc = ((parts[0] + parts[1]) + (parts[2] + parts[3])) + \
          ((parts[4] + parts[5]) + parts[6])            # (H, W)

    out = jax.nn.sigmoid(acc + b_ref[0])                # bias scalar from SMEM
    o_ref[0, 0] = out.astype(o_ref.dtype)


def _build_banded_weights(conv_w, W, Wc):
    """Host-side (numpy) banded weight construction.

    T_c[x, dy*Wc + w] = conv_w[0, c, dy, x - w + 3]  for 0 <= x - w + 3 <= 6,
    so that (row-padded plane_c) @ T_c yields, per 128-aligned dy column
    block, the W-direction convolution with zero padding already applied.
    """
    K = np.asarray(conv_w, dtype=np.float32)            # (1, 2, 7, 7)
    T = np.zeros((2, W, 7 * Wc), dtype=np.float32)
    for c in range(2):
        for dy in range(7):
            for dx in range(7):
                k = K[0, c, dy, dx]
                for w in range(W):
                    x_in = w + dx - 3
                    if 0 <= x_in < W:
                        T[c, x_in, dy * Wc + w] = k
    return jnp.asarray(T[0]), jnp.asarray(T[1])


# ---------------------------------------------------------------------------
# Wrapper
# ---------------------------------------------------------------------------
def spatial_attention_pallas(x, conv_w, conv_b):
    """x: (B, C, H, W).  Returns sigmoid(conv7x7([mean_c(x), max_c(x)])),
    shape (B, 1, H, W) -- identical semantics to the PyTorch module."""
    B, C, H, W = x.shape
    assert conv_w.shape == (1, 2, 7, 7), conv_w.shape
    assert conv_b.shape == (1,), conv_b.shape

    HW = H * W
    tc = _pick_channel_tile(C)
    nc = C // tc
    itemsize = jnp.dtype(x.dtype).itemsize

    # ---- Stage 1: lane-dense channel pooling with a C-tiling grid axis. ----
    x_flat = x.reshape(B, C, HW)                        # contiguous view
    pool_cost = pl.CostEstimate(
        flops=2 * B * C * HW,
        transcendentals=0,
        bytes_accessed=B * C * HW * itemsize + 2 * B * HW * 4)

    avg_flat, max_flat = pl.pallas_call(
        functools.partial(_channel_pool_kernel, inv_c=1.0 / C),
        out_shape=(jax.ShapeDtypeStruct((B, 1, HW), jnp.float32),
                   jax.ShapeDtypeStruct((B, 1, HW), jnp.float32)),
        grid_spec=pltpu.PrefetchScalarGridSpec(
            num_scalar_prefetch=0,
            grid=(B, nc),
            in_specs=[pl.BlockSpec((1, tc, HW), lambda b, c: (b, c, 0))],
            out_specs=(pl.BlockSpec((1, 1, HW), lambda b, c: (b, 0, 0)),
                       pl.BlockSpec((1, 1, HW), lambda b, c: (b, 0, 0))),
        ),
        compiler_params=pltpu.CompilerParams(
            dimension_semantics=("parallel", "arbitrary"),
            vmem_limit_bytes=32 * 1024 * 1024),
        cost_estimate=pool_cost,
    )(x_flat)

    avg_hw = avg_flat.reshape(B, H, W)
    max_hw = max_flat.reshape(B, H, W)

    # ---- Stage 2: 7x7 conv + sigmoid via banded-weight MXU matmuls. ----
    # TODO(synk): for W >~ 256 tile the W axis of the banded weights (3-col
    # halo) instead of one (W, 7*round_up(W,128)) matrix.
    Wc = ((W + 127) // 128) * 128                       # 128-aligned dy stride
    T0, T1 = _build_banded_weights(conv_w, W, Wc)       # each (W, 7*Wc) f32
    bias = conv_b.astype(jnp.float32)                   # (1,) -> SMEM scalar

    conv_cost = pl.CostEstimate(
        flops=2 * 2 * B * (H + 6) * W * (7 * Wc) + 8 * B * HW,
        transcendentals=B * HW,
        bytes_accessed=(3 * B * HW + 2 * W * 7 * Wc) * 4)

    out = pl.pallas_call(
        _conv7x7_sigmoid_kernel,
        out_shape=jax.ShapeDtypeStruct((B, 1, H, W), jnp.float32),
        grid_spec=pltpu.PrefetchScalarGridSpec(
            num_scalar_prefetch=0,
            grid=(B,),
            in_specs=[
                pl.BlockSpec((1, H, W), lambda b: (b, 0, 0)),
                pl.BlockSpec((1, H, W), lambda b: (b, 0, 0)),
                pl.BlockSpec((W, 7 * Wc), lambda b: (0, 0)),
                pl.BlockSpec((W, 7 * Wc), lambda b: (0, 0)),
                pl.BlockSpec(memory_space=pltpu.MemorySpace.SMEM),
            ],
            out_specs=pl.BlockSpec((1, 1, H, W), lambda b: (b, 0, 0, 0)),
        ),
        compiler_params=pltpu.CompilerParams(
            dimension_semantics=("parallel",),
            vmem_limit_bytes=32 * 1024 * 1024),
        cost_estimate=conv_cost,
    )(avg_hw, max_hw, T0, T1, bias)

    return out


# ---------------------------------------------------------------------------
# Pure-JAX reference (matches the PyTorch module semantics).
# ---------------------------------------------------------------------------
def spatial_attention_ref(x, conv_w, conv_b):
    avg = jnp.mean(x, axis=1, keepdims=True)
    mx = jnp.max(x, axis=1, keepdims=True)
    cat = jnp.concatenate([avg, mx], axis=1)            # (B, 2, H, W)
    conv = lax.conv_general_dilated(
        cat, conv_w, window_strides=(1, 1), padding=[(3, 3), (3, 3)],
        dimension_numbers=("NCHW", "OIHW", "NCHW"))
    return jax.nn.sigmoid(conv + conv_b[None, :, None, None])


if __name__ == "__main__":
    B, C, H, W = 2, 4, 16, 16

    key = jax.random.PRNGKey(0)
    kx, kw, kb = jax.random.split(key, 3)

    x = jax.random.normal(kx, (B, C, H, W), dtype=jnp.float32)
    conv_w = 0.1 * jax.random.normal(kw, (1, 2, 7, 7), dtype=jnp.float32)
    conv_b = 0.1 * jax.random.normal(kb, (1,), dtype=jnp.float32)

    out = jax.block_until_ready(spatial_attention_pallas(x, conv_w, conv_b))
    ref = jax.block_until_ready(spatial_attention_ref(x, conv_w, conv_b))

    np.testing.assert_allclose(np.asarray(out), np.asarray(ref),
                               rtol=1e-3, atol=5e-4)
    print("KERNEL_OK")
</pallas_src>

<mosaic_0001>
module attributes {stable_mosaic.version = 11 : i64} {
  func.func @_channel_pool_kernel(%arg0: i32, %arg1: i32, %arg2: memref<1x4x256xf32, #tpu.memory_space<vmem>>, %arg3: memref<1x1x256xf32, #tpu.memory_space<vmem>>, %arg4: memref<1x1x256xf32, #tpu.memory_space<vmem>>) attributes {dimension_semantics = [#tpu.dimension_semantics<parallel>, #tpu.dimension_semantics<arbitrary>], iteration_bounds = array<i64: 2, 1>, scalar_prefetch = 0 : i64, scratch_operands = 0 : i64, tpu.core_type = #tpu.core_type<tc>, window_params = [{transform_indices = @transform_0, window_bounds = array<i64: 1, 4, 256>}, {transform_indices = @transform_1, window_bounds = array<i64: 1, 1, 256>}, {transform_indices = @transform_2, window_bounds = array<i64: 1, 1, 256>}]} {
    %c0 = arith.constant 0 : index
    %c0_0 = arith.constant 0 : index
    %c0_1 = arith.constant 0 : index
    %0 = vector.load %arg2[%c0, %c0_0, %c0_1] : memref<1x4x256xf32, #tpu.memory_space<vmem>>, vector<1x4x256xf32>
    %1 = vector.shape_cast %0 : vector<1x4x256xf32> to vector<4x256xf32>
    %cst = arith.constant dense<0.000000e+00> : vector<256xf32>
    %2 = vector.multi_reduction <add>, %1, %cst [0] : vector<4x256xf32> to vector<256xf32>
    %3 = vector.shape_cast %2 : vector<256xf32> to vector<1x256xf32>
    %cst_2 = arith.constant dense<0xFF800000> : vector<256xf32>
    %4 = vector.multi_reduction <maximumf>, %1, %cst_2 [0] : vector<4x256xf32> to vector<256xf32>
    %5 = vector.shape_cast %4 : vector<256xf32> to vector<1x256xf32>
    %c0_i32 = arith.constant 0 : i32
    %6 = arith.cmpi eq, %arg1, %c0_i32 : i32
    %7 = arith.extui %6 : i1 to i32
    %c0_i32_3 = arith.constant 0 : i32
    %8 = arith.cmpi ne, %7, %c0_i32_3 : i32
    scf.if %8 {
      %c0_8 = arith.constant 0 : index
      %c0_9 = arith.constant 0 : index
      %c0_10 = arith.constant 0 : index
      %15 = vector.load %arg3[%c0_8, %c0_9, %c0_10] : memref<1x1x256xf32, #tpu.memory_space<vmem>>, vector<1x1x256xf32>
      %16 = vector.shape_cast %15 : vector<1x1x256xf32> to vector<1x256xf32>
      %17 = vector.shape_cast %3 : vector<1x256xf32> to vector<1x1x256xf32>
      tpu.vector_store %arg3[%c0_8, %c0_9, %c0_10], %17 {strides = array<i32>} : memref<1x1x256xf32, #tpu.memory_space<vmem>>, vector<1x1x256xf32>,
      %c0_11 = arith.constant 0 : index
      %c0_12 = arith.constant 0 : index
      %c0_13 = arith.constant 0 : index
      %18 = vector.load %arg4[%c0_11, %c0_12, %c0_13] : memref<1x1x256xf32, #tpu.memory_space<vmem>>, vector<1x1x256xf32>
      %19 = vector.shape_cast %18 : vector<1x1x256xf32> to vector<1x256xf32>
      %20 = vector.shape_cast %5 : vector<1x256xf32> to vector<1x1x256xf32>
      tpu.vector_store %arg4[%c0_11, %c0_12, %c0_13], %20 {strides = array<i32>} : memref<1x1x256xf32, #tpu.memory_space<vmem>>, vector<1x1x256xf32>,
    } else {
    }
    %c0_i32_4 = arith.constant 0 : i32
    %9 = arith.cmpi sgt, %arg1, %c0_i32_4 : i32
    %10 = arith.extui %9 : i1 to i32
    %c0_i32_5 = arith.constant 0 : i32
    %11 = arith.cmpi ne, %10, %c0_i32_5 : i32
    scf.if %11 {
      %c0_8 = arith.constant 0 : index
      %c0_9 = arith.constant 0 : index
      %c0_10 = arith.constant 0 : index
      %15 = vector.load %arg3[%c0_8, %c0_9, %c0_10] : memref<1x1x256xf32, #tpu.memory_space<vmem>>, vector<1x1x256xf32>
      %16 = vector.shape_cast %15 : vector<1x1x256xf32> to vector<1x256xf32>
      %17 = arith.addf %16, %3 : vector<1x256xf32>
      %c0_11 = arith.constant 0 : index
      %c0_12 = arith.constant 0 : index
      %c0_13 = arith.constant 0 : index
      %18 = vector.load %arg3[%c0_11, %c0_12, %c0_13] : memref<1x1x256xf32, #tpu.memory_space<vmem>>, vector<1x1x256xf32>
      %19 = vector.shape_cast %18 : vector<1x1x256xf32> to vector<1x256xf32>
      %20 = vector.shape_cast %17 : vector<1x256xf32> to vector<1x1x256xf32>
      tpu.vector_store %arg3[%c0_11, %c0_12, %c0_13], %20 {strides = array<i32>} : memref<1x1x256xf32, #tpu.memory_space<vmem>>, vector<1x1x256xf32>,
      %c0_14 = arith.constant 0 : index
      %c0_15 = arith.constant 0 : index
      %c0_16 = arith.constant 0 : index
      %21 = vector.load %arg4[%c0_14, %c0_15, %c0_16] : memref<1x1x256xf32, #tpu.memory_space<vmem>>, vector<1x1x256xf32>
      %22 = vector.shape_cast %21 : vector<1x1x256xf32> to vector<1x256xf32>
      %23 = arith.maximumf %22, %5 : vector<1x256xf32>
      %c0_17 = arith.constant 0 : index
      %c0_18 = arith.constant 0 : index
      %c0_19 = arith.constant 0 : index
      %24 = vector.load %arg4[%c0_17, %c0_18, %c0_19] : memref<1x1x256xf32, #tpu.memory_space<vmem>>, vector<1x1x256xf32>
      %25 = vector.shape_cast %24 : vector<1x1x256xf32> to vector<1x256xf32>
      %26 = vector.shape_cast %23 : vector<1x256xf32> to vector<1x1x256xf32>
      tpu.vector_store %arg4[%c0_17, %c0_18, %c0_19], %26 {strides = array<i32>} : memref<1x1x256xf32, #tpu.memory_space<vmem>>, vector<1x1x256xf32>,
    } else {
    }
    %c0_i32_6 = arith.constant 0 : i32
    %12 = arith.cmpi eq, %arg1, %c0_i32_6 : i32
    %13 = arith.extui %12 : i1 to i32
    %c0_i32_7 = arith.constant 0 : i32
    %14 = arith.cmpi ne, %13, %c0_i32_7 : i32
    scf.if %14 {
      %c0_8 = arith.constant 0 : index
      %c0_9 = arith.constant 0 : index
      %c0_10 = arith.constant 0 : index
      %15 = vector.load %arg3[%c0_8, %c0_9, %c0_10] : memref<1x1x256xf32, #tpu.memory_space<vmem>>, vector<1x1x256xf32>
      %16 = vector.shape_cast %15 : vector<1x1x256xf32> to vector<1x256xf32>
      %cst_11 = arith.constant 2.500000e-01 : f32
      %17 = vector.broadcast %cst_11 : f32 to vector<1x256xf32>
      %18 = arith.mulf %16, %17 : vector<1x256xf32>
      %c0_12 = arith.constant 0 : index
      %c0_13 = arith.constant 0 : index
      %c0_14 = arith.constant 0 : index
      %19 = vector.load %arg3[%c0_12, %c0_13, %c0_14] : memref<1x1x256xf32, #tpu.memory_space<vmem>>, vector<1x1x256xf32>
      %20 = vector.shape_cast %19 : vector<1x1x256xf32> to vector<1x256xf32>
      %21 = vector.shape_cast %18 : vector<1x256xf32> to vector<1x1x256xf32>
      tpu.vector_store %arg3[%c0_12, %c0_13, %c0_14], %21 {strides = array<i32>} : memref<1x1x256xf32, #tpu.memory_space<vmem>>, vector<1x1x256xf32>,
    } else {
    }
    return
  }
  func.func @transform_0(%arg0: i32, %arg1: i32) -> (i32, i32, i32) {
    %c0_i32 = arith.constant 0 : i32
    %c0_i32_0 = arith.constant 0 : i32
    return %arg0, %arg1, %c0_i32 : i32, i32, i32
  }
  func.func @transform_1(%arg0: i32, %arg1: i32) -> (i32, i32, i32) {
    %c0_i32 = arith.constant 0 : i32
    %c0_i32_0 = arith.constant 0 : i32
    %c0_i32_1 = arith.constant 0 : i32
    return %arg0, %c0_i32, %c0_i32_0 : i32, i32, i32
  }
  func.func @transform_2(%arg0: i32, %arg1: i32) -> (i32, i32, i32) {
    %c0_i32 = arith.constant 0 : i32
    %c0_i32_0 = arith.constant 0 : i32
    %c0_i32_1 = arith.constant 0 : i32
    return %arg0, %c0_i32, %c0_i32_0 : i32, i32, i32
  }
}

</mosaic_0001>

<llo_original>
// kernel: tpu_custom_call.1
$region0: #{tpu_custom_call.1}
  #allocation0 [shape = 'u32[]', space=smem, size = 0x4, offset = 0x4, fixed_abs, tag = 'smem constant byte address 0x4 - core index']
  #allocation1 [shape = 'u32[144,128]{1,0:T(1,128)}', space=vmem, size = 0x12000, scoped, tag = 'internal scratch']
  %s0 = inlined_call_operand.hbm [shape: f32[2,4,256], index: 0, kind: input, shape index: {}]
  %s1 = inlined_call_operand.hbm [shape: f32[2,1,256], index: 1, kind: output, shape index: {0}]
  %s2 = inlined_call_operand.hbm [shape: f32[2,1,256], index: 2, kind: output, shape index: {1}]
  %3 = xla_tuple %s1, %s2
  %s4 = sld [smem:[#allocation0]]
  $region61: #{tpu_custom_call.1} parent=0
    _
  %s6 = ssub.s32 1, %s4
  %s7 = scalar_select 0, %s6, %s4
  $region1: #{tpu_custom_call.1} parent=0
    #allocation2 [shape = 'u8[8192]{0}', space=vmem, size = 0x2000, scoped, tag = 'input window, operand 0']
    #allocation3 [shape = 's32[2]{0}', space=sflag, size = 0x8, scoped, tag = 'scoped memory for tpu_custom_call.1']
    #allocation4 [shape = 's32[2]{0}', space=sflag, size = 0x8, scoped, tag = 'scoped memory for tpu_custom_call.1']
    #allocation5 [shape = 'u8[2048]{0}', space=vmem, size = 0x800, scoped, tag = 'output window, operand 0']
    #allocation6 [shape = 'u8[2048]{0}', space=vmem, size = 0x800, scoped, tag = 'output window, operand 1']
    #allocation7 [shape = 's32[2]{0}', space=sflag, size = 0x8, scoped, tag = 'scoped memory for tpu_custom_call.1']
    %8 = vsyncpa [#allocation3], 0
    %s9 = scalar_lea.sflag [#allocation3], 1
    %10 = vsyncpa %s9, 0
    %11 = vsyncpa [#allocation4], 0
    %s12 = scalar_lea.sflag [#allocation4], 1
    %13 = vsyncpa %s12, 0
    %14 = vsyncpa [#allocation7], 0
    %s15 = scalar_lea.sflag [#allocation7], 1
    %16 = vsyncpa %s15, 0
    loop: start=0, step=1, limit=4
    $region2: #{tpu_custom_call.1} parent=1 // loop_pre_header
      _
    $region3: #{tpu_custom_call.1} parent=1 // loop_header
      %s18 = sphi 0, %s22
      %p19 = scmp.ge.s32.totalorder %s18, 4
      %s25 = sphi 0, %s37
      %s26 = sphi 0, %s33
      %s27 = sphi 0, %s25
      %s28 = sphi 0, %s26
      %s29 = sphi 0, %s27
      %s30 = sphi 0, %s28
      %s42 = sphi 0, %s44
      %s45 = sphi 0, %s42
      %s46 = sphi 0, %s45
      %s62 = sphi 0, %s46
      %s68 = sphi 0, %s70
      %s71 = sphi 0, %s68
      %s72 = sphi 0, %s71
      %s88 = sphi 0, %s72
      %s94 = sphi 0, %s96
      %s97 = sphi 0, %s94
      %s98 = sphi 0, %s97
      %s114 = sphi 0, %s98
    $region4: #{tpu_custom_call.1} parent=1 // loop_header_branch
      %21 = sbr.rel (%p19) target = $region8
    $region5: #{tpu_custom_call.1} parent=1 // loop_body
      %s23 = ssub.s32 %s18, 1
      %s24 = ssub.s32 %s18, 2
      %s31 = sadd.s32 1, %s26
      %p32 = scmp.ge.s32.totalorder %s31, 1
      %s33 = scalar_select %p32, 0, %s31
      %s34 = sadd.s32 1, %s25
      %s35 = scalar_select %p32, %s34, %s25
      %p36 = scmp.ge.s32.totalorder %s35, 2
      %s37 = scalar_select %p36, 0, %s35
      %s38 = ssub.s32 %s25, %s37
      %s39 = ssub.s32 %s26, %s33
      %s40 = sor.u32 %s38, %s39
      %p41 = scmp.eq.s32.totalorder %s40, 0
      %s43 = sadd.s32 %s42, 1
      %s44 = scalar_select %p41, %s42, %s43
      %p47 = pneg %p41
      %p48 = scmp.eq.s32.totalorder %s18, 1
      %p49 = por %p47, %p48
      %p50 = scmp.ne.s32.totalorder %s42, %s45
      %p51 = scmp.eq.s32.totalorder %s18, 0
      %p52 = por %p50, %p51
      %p53 = scmp.ne.s32.totalorder %s42, %s45
      %p54 = scmp.eq.s32.totalorder %s23, 1
      %p55 = por %p53, %p54
      %p56 = scmp.ne.s32.totalorder %s45, %s46
      %p57 = scmp.eq.s32.totalorder %s23, 0
      %p58 = por %p56, %p57
      %p59 = scmp.ne.s32.totalorder %s45, %s46
      %p60 = scmp.eq.s32.totalorder %s24, 1
      %p61 = por %p59, %p60
      %p63 = scmp.ne.s32.totalorder %s46, %s62
      %p64 = scmp.eq.s32.totalorder %s24, 0
      %p65 = por %p63, %p64
      %s66 = ssub.s32 %s25, %s37
      %p67 = scmp.eq.s32.totalorder %s66, 0
      %s69 = sadd.s32 %s68, 1
      %s70 = scalar_select %p67, %s68, %s69
      %p73 = pneg %p67
      %p74 = scmp.eq.s32.totalorder %s18, 1
      %p75 = por %p73, %p74
      %p76 = scmp.ne.s32.totalorder %s68, %s71
      %p77 = scmp.eq.s32.totalorder %s18, 0
      %p78 = por %p76, %p77
      %p79 = scmp.ne.s32.totalorder %s68, %s71
      %p80 = scmp.eq.s32.totalorder %s23, 1
      %p81 = por %p79, %p80
      %p82 = scmp.ne.s32.totalorder %s71, %s72
      %p83 = scmp.eq.s32.totalorder %s23, 0
      %p84 = por %p82, %p83
      %p85 = scmp.ne.s32.totalorder %s71, %s72
      %p86 = scmp.eq.s32.totalorder %s24, 1
      %p87 = por %p85, %p86
      %p89 = scmp.ne.s32.totalorder %s72, %s88
      %p90 = scmp.eq.s32.totalorder %s24, 0
      %p91 = por %p89, %p90
      %s92 = ssub.s32 %s25, %s37
      %p93 = scmp.eq.s32.totalorder %s92, 0
      %s95 = sadd.s32 %s94, 1
      %s96 = scalar_select %p93, %s94, %s95
      %p99 = pneg %p93
      %p100 = scmp.eq.s32.totalorder %s18, 1
      %p101 = por %p99, %p100
      %p102 = scmp.ne.s32.totalorder %s94, %s97
      %p103 = scmp.eq.s32.totalorder %s18, 0
      %p104 = por %p102, %p103
      %p105 = scmp.ne.s32.totalorder %s94, %s97
      %p106 = scmp.eq.s32.totalorder %s23, 1
      %p107 = por %p105, %p106
      %p108 = scmp.ne.s32.totalorder %s97, %s98
      %p109 = scmp.eq.s32.totalorder %s23, 0
      %p110 = por %p108, %p109
      %p111 = scmp.ne.s32.totalorder %s97, %s98
      %p112 = scmp.eq.s32.totalorder %s24, 1
      %p113 = por %p111, %p112
      %p115 = scmp.ne.s32.totalorder %s98, %s114
      %p116 = scmp.eq.s32.totalorder %s24, 0
      %p117 = por %p115, %p116
      %p118 = scmp.le.s32.totalorder 1, %s18
      %p119 = scmp.lt.s32.totalorder %s18, 3
      %p120 = pnand %p118, %p119
      %p121 = pneg %p120
      // Predicated region
      $region9: #{tpu_custom_call.1} parent=5 // pred_check
        _
      $region10: #{tpu_custom_call.1} parent=5 // pred_check_branch
        %123 = sbr.rel (%p120) target = $region12
      $region11: #{tpu_custom_call.1} parent=5 // pred_region
        %s124 = ssub.s32 %s18, 1
      $region12: #{tpu_custom_call.1} parent=5 // pred_fallthru
        _
      %p125 = scmp.lt.s32.totalorder %s18, 2
      // Predicated region
      $region13: #{tpu_custom_call.1} parent=5 // pred_check
        %p126 = pneg %p125
      $region14: #{tpu_custom_call.1} parent=5 // pred_check_branch
        %128 = sbr.rel (%p126) target = $region16
      $region15: #{tpu_custom_call.1} parent=5 // pred_region
        // Predicated region
        $region17: #{tpu_custom_call.1} parent=15 // pred_check
          %p129 = pneg %p52
        $region18: #{tpu_custom_call.1} parent=15 // pred_check_branch
          %131 = sbr.rel (%p129) target = $region20
        $region19: #{tpu_custom_call.1} parent=15 // pred_region
          %s132 = sand.u32 %s42, 1
          %s133 = scalar_lea.sflag [#allocation3], %s132
          %s134 = sand.u32 %s42, 1
          %s135 = smul.addr %s134, 8
          %s136 = scalar_lea.vmem [#allocation2], %s135
          %s138 = ssub.s32 128, 128
          %139 = vsyncadd %s133, %s138
          %s140 = smul.addr %s26, 2
          %s141 = smul.addr %s25, 2
          %s142 = sadd.s32 %s140, %s141
          %s143 = smul.addr %s142, 64
          %s144 = scalar_lea.hbm %s0, %s143
          %s146 = sshll.u32 %s136, 4
          %s147 = int_to_ptr.vmem [resolvable:$true] %s146
          %149 = dma.hbm_to_vmem [thread:$0]  %s144, 128, %s147, %s133
        $region20: #{tpu_custom_call.1} parent=15 // pred_fallthru
          _
      $region16: #{tpu_custom_call.1} parent=5 // pred_fallthru
        _
      %p150 = scmp.le.s32.totalorder 1, %s18
      %p151 = scmp.lt.s32.totalorder %s18, 3
      %p152 = pnand %p150, %p151
      %p153 = pneg %p152
      // Predicated region
      $region21: #{tpu_custom_call.1} parent=5 // pred_check
        _
      $region22: #{tpu_custom_call.1} parent=5 // pred_check_branch
        %155 = sbr.rel (%p152) target = $region24
      $region23: #{tpu_custom_call.1} parent=5 // pred_region
        %s156 = ssub.s32 %s18, 1
        %s157 = sand.u32 %s45, 1
        %s158 = scalar_lea.sflag [#allocation3], %s157
        %s159 = sand.u32 %s45, 1
        %s160 = smul.addr %s159, 8
        %s161 = scalar_lea.vmem [#allocation2], %s160
        // Predicated region
        $region25: #{tpu_custom_call.1} parent=23 // pred_check
          %p162 = pneg %p58
        $region26: #{tpu_custom_call.1} parent=23 // pred_check_branch
          %164 = sbr.rel (%p162) target = $region28
        $region27: #{tpu_custom_call.1} parent=23 // pred_region
          %165 = dma.done %s158, 128
        $region28: #{tpu_custom_call.1} parent=23 // pred_fallthru
          _
        %s166 = sand.u32 %s45, 1
        %s167 = scalar_lea.sflag [#allocation3], %s166
        %s168 = sand.u32 %s45, 1
        %s169 = smul.addr %s168, 8
        %s170 = scalar_lea.vmem [#allocation2], %s169
        %p171 = pneg %p58
        %p172 = pneg %p55
        %p173 = pneg %p84
        %p174 = pneg %p81
        %s175 = sand.u32 %s71, 1
        %s176 = scalar_lea.sflag [#allocation4], %s175
        %s177 = sand.u32 %s71, 1
        %s178 = smul.addr %s177, 2
        %s179 = scalar_lea.vmem [#allocation5], %s178
        %p180 = pneg %p110
        %p181 = pneg %p107
        %s182 = sand.u32 %s97, 1
        %s183 = scalar_lea.sflag [#allocation7], %s182
        %s184 = sand.u32 %s97, 1
        %s185 = smul.addr %s184, 2
        %s186 = scalar_lea.vmem [#allocation6], %s185
        %v187 = vld [vmem:[%s161] sm:$0xff]
        %v189 = vcombine.high %v187, %v187
        %vm191 = vcmask 1043456
        %v192 = vsel %vm191, %v187, 0.0
        %v193 = vrot.slane %v192, 4
        %v194 = vadd.f32 %v192, %v193
        %v195 = vrot.slane %v194, 2
        %v196 = vadd.f32 %v194, %v195
        %v197 = vrot.slane %v196, 1
        %v198 = vadd.f32 %v196, %v197
        %v199 = vsel %vm191, %v189, 0.0
        %v200 = vrot.slane %v199, 4
        %v201 = vadd.f32 %v199, %v200
        %v202 = vrot.slane %v201, 2
        %v203 = vadd.f32 %v201, %v202
        %v204 = vrot.slane %v203, 1
        %v205 = vadd.f32 %v203, %v204
        %v206 = vsel %vm191, %v187, -inf
        %v207 = vrot.slane %v206, 4
        %v208 = vmax.f32 %v206, %v207
        %v209 = vrot.slane %v208, 2
        %v210 = vmax.f32 %v208, %v209
        %v211 = vrot.slane %v210, 1
        %v212 = vmax.f32 %v210, %v211
        %v213 = vsel %vm191, %v189, -inf
        %v214 = vrot.slane %v213, 4
        %v215 = vmax.f32 %v213, %v214
        %v216 = vrot.slane %v215, 2
        %v217 = vmax.f32 %v215, %v216
        %v218 = vrot.slane %v217, 1
        %v219 = vmax.f32 %v217, %v218
        %p220 = scmp.eq.s32.totalorder %s28, 0
        // Predicated region
        $region29: #{tpu_custom_call.1} parent=23 // pred_check
          %p221 = pneg %p220
        $region30: #{tpu_custom_call.1} parent=23 // pred_check_branch
          %223 = sbr.rel (%p221) target = $region32
        $region31: #{tpu_custom_call.1} parent=23 // pred_region
          %v226 = vcombine.low %v198, %v205
          %v228 = vunpack.c.l.s4 1966171168
          %v229 = vunpack.c.0.s8 %v228
          %v230 = vlaneseq
          %v231 = vshrl.u32 %v230, 7
          %v232 = vsub.s32 %v229, %v231
          %v233 = vrot.slane %v226, %v232
          %v235 = vunpack.c.l.s4 1966171168
          %v236 = vunpack.c.0.s8 %v235
          %v237 = vlaneseq
          %v238 = vshrl.u32 %v237, 7
          %v239 = vsub.s32 %v236, %v238
          %v240 = vrot.slane %v233, %v239
          %v242 = vlaneseq
          %vm243 = vcmp.ge.s32.totalorder %v242, 0
          %vm244 = vcmp.lt.s32.totalorder %v242, 256
          %vm245 = vmand %vm243, %vm244
          %246 = vst.msk [vmem:[%s179] sm:$0x3] %vm245, %v240
          %v249 = vcombine.low %v212, %v219
          %v251 = vunpack.c.l.s4 1966171168
          %v252 = vunpack.c.0.s8 %v251
          %v253 = vlaneseq
          %v254 = vshrl.u32 %v253, 7
          %v255 = vsub.s32 %v252, %v254
          %v256 = vrot.slane %v249, %v255
          %v258 = vunpack.c.l.s4 1966171168
          %v259 = vunpack.c.0.s8 %v258
          %v260 = vlaneseq
          %v261 = vshrl.u32 %v260, 7
          %v262 = vsub.s32 %v259, %v261
          %v263 = vrot.slane %v256, %v262
          %265 = vst.msk [vmem:[%s186] sm:$0x3] %vm245, %v263
        $region32: #{tpu_custom_call.1} parent=23 // pred_fallthru
          _
        %p266 = scmp.gt.s32.totalorder %s28, 0
        // Predicated region
        $region33: #{tpu_custom_call.1} parent=23 // pred_check
          %p267 = pneg %p266
        $region34: #{tpu_custom_call.1} parent=23 // pred_check_branch
          %269 = sbr.rel (%p267) target = $region36
        $region35: #{tpu_custom_call.1} parent=23 // pred_region
          %v270 = vld [vmem:[%s179] sm:$0x3]
          %v273 = vcombine.low %v198, %v205
          %v275 = vunpack.c.l.s4 1966171168
          %v276 = vunpack.c.0.s8 %v275
          %v277 = vlaneseq
          %v278 = vshrl.u32 %v277, 7
          %v279 = vsub.s32 %v276, %v278
          %v280 = vrot.slane %v273, %v279
          %v282 = vunpack.c.l.s4 1966171168
          %v283 = vunpack.c.0.s8 %v282
          %v284 = vlaneseq
          %v285 = vshrl.u32 %v284, 7
          %v286 = vsub.s32 %v283, %v285
          %v287 = vrot.slane %v280, %v286
          %v289 = vadd.f32 %v270, %v287
          %v290 = vlaneseq
          %vm291 = vcmp.ge.s32.totalorder %v290, 0
          %vm292 = vcmp.lt.s32.totalorder %v290, 256
          %vm293 = vmand %vm291, %vm292
          %294 = vst.msk [vmem:[%s179] sm:$0x3] %vm293, %v289
          %v295 = vld [vmem:[%s186] sm:$0x3]
          %v298 = vcombine.low %v212, %v219
          %v300 = vunpack.c.l.s4 1966171168
          %v301 = vunpack.c.0.s8 %v300
          %v302 = vlaneseq
          %v303 = vshrl.u32 %v302, 7
          %v304 = vsub.s32 %v301, %v303
          %v305 = vrot.slane %v298, %v304
          %v307 = vunpack.c.l.s4 1966171168
          %v308 = vunpack.c.0.s8 %v307
          %v309 = vlaneseq
          %v310 = vshrl.u32 %v309, 7
          %v311 = vsub.s32 %v308, %v310
          %v312 = vrot.slane %v305, %v311
          %v314 = vmax.f32 %v295, %v312
          %315 = vst.msk [vmem:[%s186] sm:$0x3] %vm293, %v314
        $region36: #{tpu_custom_call.1} parent=23 // pred_fallthru
          _
        // Predicated region
        $region37: #{tpu_custom_call.1} parent=23 // pred_check
          %p316 = pneg %p220
        $region38: #{tpu_custom_call.1} parent=23 // pred_check_branch
          %318 = sbr.rel (%p316) target = $region40
        $region39: #{tpu_custom_call.1} parent=23 // pred_region
          %v319 = vld [vmem:[%s179] sm:$0x3]
          %v320 = vmul.f32 %v319, 0.25
          %v321 = vlaneseq
          %vm322 = vcmp.ge.s32.totalorder %v321, 0
          %vm323 = vcmp.lt.s32.totalorder %v321, 256
          %vm324 = vmand %vm322, %vm323
          %325 = vst.msk [vmem:[%s179] sm:$0x3] %vm324, %v320
        $region40: #{tpu_custom_call.1} parent=23 // pred_fallthru
          _
        %s326 = sand.u32 %s71, 1
        %s327 = scalar_lea.sflag [#allocation4], %s326
        %s328 = sand.u32 %s71, 1
        %s329 = smul.addr %s328, 2
        %s330 = scalar_lea.vmem [#allocation5], %s329
        %s331 = sand.u32 %s97, 1
        %s332 = scalar_lea.sflag [#allocation7], %s331
        %s333 = sand.u32 %s97, 1
        %s334 = smul.addr %s333, 2
        %s335 = scalar_lea.vmem [#allocation6], %s334
        // Predicated region
        $region41: #{tpu_custom_call.1} parent=23 // pred_check
          %p336 = pneg %p81
        $region42: #{tpu_custom_call.1} parent=23 // pred_check_branch
          %338 = sbr.rel (%p336) target = $region44
        $region43: #{tpu_custom_call.1} parent=23 // pred_region
          %s340 = ssub.s32 32, 32
          %341 = vsyncadd %s327, %s340
          %s342 = smul.addr %s27, 2
          %s343 = smul.addr %s342, 16
          %s344 = scalar_lea.hbm %s1, %s343
          %s346 = sshll.u32 %s330, 4
          %s347 = int_to_ptr.vmem [resolvable:$true] %s346
          %349 = dma.vmem_to_hbm [thread:$0]  %s347, 32, %s344, %s327
        $region44: #{tpu_custom_call.1} parent=23 // pred_fallthru
          _
        // Predicated region
        $region45: #{tpu_custom_call.1} parent=23 // pred_check
          %p350 = pneg %p107
        $region46: #{tpu_custom_call.1} parent=23 // pred_check_branch
          %352 = sbr.rel (%p350) target = $region48
        $region47: #{tpu_custom_call.1} parent=23 // pred_region
          %s354 = ssub.s32 32, 32
          %355 = vsyncadd %s332, %s354
          %s356 = smul.addr %s27, 2
          %s357 = smul.addr %s356, 16
          %s358 = scalar_lea.hbm %s2, %s357
          %s360 = sshll.u32 %s335, 4
          %s361 = int_to_ptr.vmem [resolvable:$true] %s360
          %363 = dma.vmem_to_hbm [thread:$0]  %s361, 32, %s358, %s332
        $region48: #{tpu_custom_call.1} parent=23 // pred_fallthru
          _
      $region24: #{tpu_custom_call.1} parent=5 // pred_fallthru
        _
      %p364 = scmp.le.s32.totalorder 2, %s18
      // Predicated region
      $region49: #{tpu_custom_call.1} parent=5 // pred_check
        %p365 = pneg %p364
      $region50: #{tpu_custom_call.1} parent=5 // pred_check_branch
        %367 = sbr.rel (%p365) target = $region52
      $region51: #{tpu_custom_call.1} parent=5 // pred_region
        %s368 = ssub.s32 %s18, 2
        // Predicated region
        $region53: #{tpu_custom_call.1} parent=51 // pred_check
          %p369 = pneg %p87
        $region54: #{tpu_custom_call.1} parent=51 // pred_check_branch
          %371 = sbr.rel (%p369) target = $region56
        $region55: #{tpu_custom_call.1} parent=51 // pred_region
          %s372 = sand.u32 %s72, 1
          %s373 = scalar_lea.sflag [#allocation4], %s372
          %s374 = sand.u32 %s72, 1
          %s375 = smul.addr %s374, 2
          %s376 = scalar_lea.vmem [#allocation5], %s375
          %377 = dma.done %s373, 32
        $region56: #{tpu_custom_call.1} parent=51 // pred_fallthru
          _
        // Predicated region
        $region57: #{tpu_custom_call.1} parent=51 // pred_check
          %p378 = pneg %p113
        $region58: #{tpu_custom_call.1} parent=51 // pred_check_branch
          %380 = sbr.rel (%p378) target = $region60
        $region59: #{tpu_custom_call.1} parent=51 // pred_region
          %s381 = sand.u32 %s98, 1
          %s382 = scalar_lea.sflag [#allocation7], %s381
          %s383 = sand.u32 %s98, 1
          %s384 = smul.addr %s383, 2
          %s385 = scalar_lea.vmem [#allocation6], %s384
          %386 = dma.done %s382, 32
        $region60: #{tpu_custom_call.1} parent=51 // pred_fallthru
          _
      $region52: #{tpu_custom_call.1} parent=5 // pred_fallthru
        _
    $region6: #{tpu_custom_call.1} parent=1 // loop_footer
      %s22 = sadd.s32 1, %s18
    $region7: #{tpu_custom_call.1} parent=1 // loop_footer_branch
      %17 = sbr.rel target = $region3
    $region8: #{tpu_custom_call.1} parent=1 // loop_exit
      _
    %387 = vsyncpa [#allocation3], 1
    %s388 = scalar_lea.sflag [#allocation3], 1
    %389 = vsyncpa %s388, 1
    %390 = vsyncpa [#allocation4], 1
    %s391 = scalar_lea.sflag [#allocation4], 1
    %392 = vsyncpa %s391, 1
    %393 = vsyncpa [#allocation7], 1
    %s394 = scalar_lea.sflag [#allocation7], 1
    %395 = vsyncpa %s394, 1

</llo_original>
